<compile_context>
chip_gen: v6e
topology: v6e:2x2x1
jax: 0.10.0
libtpu: 0.0.40
codegen_flags: <defaults>
</compile_context>

<pallas_src>
import functools

import jax
import jax.numpy as jnp
from jax import lax
from jax.experimental import pallas as pl
from jax.experimental.pallas import tpu as pltpu

BN_EPS = 1e-5
LEAKY_SLOPE = 0.01  # nn.LeakyReLU default negative_slope
LANE = 128


def _round_up(v, m):
    return ((v + m - 1) // m) * m


def _choose_tiles(in_size, out_size):
    """Pick K / out tile sizes (static, derived from the problem shape)."""
    # K (reduction) tiling: single full-K step for small K, else 512-wide tiles.
    if in_size <= 512:
        k_pad, tk = in_size, in_size            # block == full dim is always legal
    else:
        k_pad = _round_up(in_size, 512)
        tk = 512
    # Output tiling: always lane-dense (multiple of 128).
    out_pad = _round_up(out_size, LANE)
    if out_pad % 512 == 0:
        tn = 512
    elif out_pad % 256 == 0:
        tn = 256
    else:
        tn = LANE
    return k_pad, tk, out_pad, tn


def dense_kernel(x_ref, wt_ref, gamma_ref, beta_ref, o_ref, acc_ref):
    # Grid: (out tiles [parallel], K tiles [arbitrary, last]).
    # x_ref:     (N, tk)   bf16  — full N per block (needed for exact BN stats)
    # wt_ref:    (tk, tn)  bf16  — W^T tile
    # gamma_ref: (1, tn)   f32
    # beta_ref:  (1, tn)   f32
    # o_ref:     (N, tn)   f32
    # acc_ref:   (N, tn)   f32 scratch accumulator
    k = pl.program_id(1)

    @pl.when(k == 0)
    def _():
        acc_ref[...] = jnp.zeros_like(acc_ref)

    # Linear (no bias) on the MXU: bf16 inputs, f32 accumulation.
    acc_ref[...] += jnp.dot(x_ref[...], wt_ref[...],
                            preferred_element_type=jnp.float32)

    @pl.when(k == pl.num_programs(1) - 1)
    def _():
        y = acc_ref[...]                                        # (N, tn) f32
        inv_n = 1.0 / y.shape[0]
        # BatchNorm1d training mode: batch mean / biased variance over rows.
        mean = jnp.sum(y, axis=0, keepdims=True) * inv_n        # (1, tn)
        diff = y - mean
        var = jnp.sum(diff * diff, axis=0, keepdims=True) * inv_n
        # Fold BN into a single FMA per element (rsqrt runs on the EUP slot).
        scale = gamma_ref[...] * lax.rsqrt(var + BN_EPS)        # (1, tn)
        bias = beta_ref[...] - mean * scale                     # (1, tn)
        z = y * scale + bias
        # LeakyReLU
        o_ref[...] = jnp.where(z >= 0.0, z, LEAKY_SLOPE * z)


def prepare_dense_params(weight, gamma, beta):
    """One-time parameter prep (transpose/cast/pad) hoisted out of the hot path.

    weight: (out_size, in_size) as in nn.Linear.
    Returns (wt_padded bf16 (K_pad, out_pad), gamma (1, out_pad) f32,
             beta (1, out_pad) f32).
    """
    out_size, in_size = weight.shape
    k_pad, _, out_pad, _ = _choose_tiles(in_size, out_size)

    wt = weight.astype(jnp.float32).T                           # (in, out)
    wt = jnp.pad(wt, ((0, k_pad - in_size), (0, out_pad - out_size)))
    wt = wt.astype(jnp.bfloat16)

    gamma_p = jnp.pad(gamma.reshape(1, -1).astype(jnp.float32),
                      ((0, 0), (0, out_pad - out_size)), constant_values=1.0)
    beta_p = jnp.pad(beta.reshape(1, -1).astype(jnp.float32),
                     ((0, 0), (0, out_pad - out_size)), constant_values=0.0)
    return wt, gamma_p, beta_p


@functools.partial(jax.jit, static_argnames=("in_size", "out_size"))
def dense_forward(x, wt_p, gamma_p, beta_p, *, in_size, out_size):
    """x: any shape with trailing dims flattening to (-1, in_size).
    wt_p/gamma_p/beta_p: outputs of prepare_dense_params.
    Returns (N, out_size) float32."""
    k_pad, tk, out_pad, tn = _choose_tiles(in_size, out_size)

    x2d = x.reshape(-1, in_size)
    n = x2d.shape[0]
    xb = x2d.astype(jnp.bfloat16)
    if k_pad != in_size:
        xb = jnp.pad(xb, ((0, 0), (0, k_pad - in_size)))

    grid = (out_pad // tn, k_pad // tk)

    out = pl.pallas_call(
        dense_kernel,
        out_shape=jax.ShapeDtypeStruct((n, out_pad), jnp.float32),
        grid_spec=pltpu.PrefetchScalarGridSpec(
            num_scalar_prefetch=0,
            grid=grid,
            in_specs=[
                pl.BlockSpec((n, tk), lambda j, k: (0, k)),   # x: full N, K-tiled
                pl.BlockSpec((tk, tn), lambda j, k: (k, j)),  # W^T tile
                pl.BlockSpec((1, tn), lambda j, k: (0, j)),   # gamma
                pl.BlockSpec((1, tn), lambda j, k: (0, j)),   # beta
            ],
            out_specs=pl.BlockSpec((n, tn), lambda j, k: (0, j)),
            scratch_shapes=[pltpu.VMEM((n, tn), jnp.float32)],
        ),
        compiler_params=pltpu.CompilerParams(
            dimension_semantics=("parallel", "arbitrary")),
    )(xb, wt_p, gamma_p, beta_p)

    return out[:, :out_size]


def reference_forward(x, weight, gamma, beta, in_size, *, bf16_inputs=False):
    """Pure-JAX reference matching PyTorch training-mode forward.
    With bf16_inputs=True the matmul inputs are rounded to bf16 (what the
    kernel feeds the MXU) but accumulated in f32."""
    x2d = x.reshape(-1, in_size).astype(jnp.float32)
    w = weight.astype(jnp.float32)
    if bf16_inputs:
        x2d = x2d.astype(jnp.bfloat16).astype(jnp.float32)
        w = w.astype(jnp.bfloat16).astype(jnp.float32)
    y = jnp.dot(x2d, w.T, precision=lax.Precision.HIGHEST)
    mean = jnp.mean(y, axis=0, keepdims=True)
    var = jnp.mean((y - mean) ** 2, axis=0, keepdims=True)
    xhat = (y - mean) / jnp.sqrt(var + BN_EPS)
    z = xhat * gamma.reshape(1, -1) + beta.reshape(1, -1)
    return jnp.where(z >= 0.0, z, LEAKY_SLOPE * z)


if __name__ == "__main__":
    in_size, out_size = 32, 16
    key = jax.random.PRNGKey(0)
    kx, kw = jax.random.split(key)

    # Input: (2, 4, 32) -> view(-1, 32) => N = 8 rows.
    x = jax.random.normal(kx, (2, 4, in_size), dtype=jnp.float32)

    # nn.Linear default init: U(-1/sqrt(in), 1/sqrt(in)); deterministic here.
    bound = 1.0 / (in_size ** 0.5)
    weight = jax.random.uniform(
        kw, (out_size, in_size), minval=-bound, maxval=bound, dtype=jnp.float32
    )
    # BatchNorm1d affine params default: gamma=1, beta=0.
    gamma = jnp.ones((out_size,), dtype=jnp.float32)
    beta = jnp.zeros((out_size,), dtype=jnp.float32)

    # One-time parameter prep (transpose / bf16 cast / lane padding).
    wt_p, gamma_p, beta_p = prepare_dense_params(weight, gamma, beta)

    out = dense_forward(x, wt_p, gamma_p, beta_p,
                        in_size=in_size, out_size=out_size)
    out = jax.block_until_ready(out)
    assert out.shape == (8, out_size)

    # Tight check vs. a reference that uses the same bf16 MXU inputs.
    ref_bf16 = reference_forward(x, weight, gamma, beta, in_size, bf16_inputs=True)
    assert jnp.allclose(out, ref_bf16, atol=1e-4, rtol=1e-4), \
        "mismatch vs bf16-input reference"

    # Loose check vs. the full-f32 PyTorch-semantics reference (bf16 MXU delta).
    ref_f32 = reference_forward(x, weight, gamma, beta, in_size, bf16_inputs=False)
    assert jnp.allclose(out, ref_f32, atol=3e-2, rtol=3e-2), \
        "mismatch vs f32 reference"

    print("KERNEL_OK")
</pallas_src>

<mosaic_0001>
module attributes {stable_mosaic.version = 11 : i64} {
  func.func @dense_kernel(%arg0: i32, %arg1: i32, %arg2: memref<8x32xbf16, #tpu.memory_space<vmem>>, %arg3: memref<32x128xbf16, #tpu.memory_space<vmem>>, %arg4: memref<1x128xf32, #tpu.memory_space<vmem>>, %arg5: memref<1x128xf32, #tpu.memory_space<vmem>>, %arg6: memref<8x128xf32, #tpu.memory_space<vmem>>, %arg7: memref<8x128xf32, #tpu.memory_space<vmem>>) attributes {dimension_semantics = [#tpu.dimension_semantics<parallel>, #tpu.dimension_semantics<arbitrary>], iteration_bounds = array<i64: 1, 1>, scalar_prefetch = 0 : i64, scratch_operands = 1 : i64, tpu.core_type = #tpu.core_type<tc>, window_params = [{transform_indices = @transform_0, window_bounds = array<i64: 8, 32>}, {transform_indices = @transform_1, window_bounds = array<i64: 32, 128>}, {transform_indices = @transform_2, window_bounds = array<i64: 1, 128>}, {transform_indices = @transform_3, window_bounds = array<i64: 1, 128>}, {transform_indices = @transform_4, window_bounds = array<i64: 8, 128>}]} {
    %c0_i32 = arith.constant 0 : i32
    %0 = arith.cmpi eq, %arg1, %c0_i32 : i32
    %1 = arith.extui %0 : i1 to i32
    %c0_i32_0 = arith.constant 0 : i32
    %2 = arith.cmpi ne, %1, %c0_i32_0 : i32
    scf.if %2 {
      %cst_10 = arith.constant 0.000000e+00 : f32
      %12 = vector.broadcast %cst_10 : f32 to vector<8x128xf32>
      %c0_11 = arith.constant 0 : index
      %c0_12 = arith.constant 0 : index
      %13 = vector.load %arg7[%c0_11, %c0_12] : memref<8x128xf32, #tpu.memory_space<vmem>>, vector<8x128xf32>
      tpu.vector_store %arg7[%c0_11, %c0_12], %12 {strides = array<i32>} : memref<8x128xf32, #tpu.memory_space<vmem>>, vector<8x128xf32>,
    } else {
    }
    %c0 = arith.constant 0 : index
    %c0_1 = arith.constant 0 : index
    %3 = vector.load %arg7[%c0, %c0_1] : memref<8x128xf32, #tpu.memory_space<vmem>>, vector<8x128xf32>
    %c0_2 = arith.constant 0 : index
    %c0_3 = arith.constant 0 : index
    %4 = vector.load %arg2[%c0_2, %c0_3] : memref<8x32xbf16, #tpu.memory_space<vmem>>, vector<8x32xbf16>
    %c0_4 = arith.constant 0 : index
    %c0_5 = arith.constant 0 : index
    %5 = vector.load %arg3[%c0_4, %c0_5] : memref<32x128xbf16, #tpu.memory_space<vmem>>, vector<32x128xbf16>
    %cst = arith.constant dense<0.000000e+00> : vector<8x128xf32>
    %6 = tpu.matmul %4, %5, %cst {dimension_numbers = #tpu.dot_dimension_numbers<[1], [0], [0], [1], [0, 0, 1, 1], [], []>} : vector<8x32xbf16>, vector<32x128xbf16>, vector<8x128xf32> -> vector<8x128xf32>
    %7 = arith.addf %3, %6 : vector<8x128xf32>
    %c0_6 = arith.constant 0 : index
    %c0_7 = arith.constant 0 : index
    %8 = vector.load %arg7[%c0_6, %c0_7] : memref<8x128xf32, #tpu.memory_space<vmem>>, vector<8x128xf32>
    tpu.vector_store %arg7[%c0_6, %c0_7], %7 {strides = array<i32>} : memref<8x128xf32, #tpu.memory_space<vmem>>, vector<8x128xf32>,
    %c0_i32_8 = arith.constant 0 : i32
    %9 = arith.cmpi eq, %arg1, %c0_i32_8 : i32
    %10 = arith.extui %9 : i1 to i32
    %c0_i32_9 = arith.constant 0 : i32
    %11 = arith.cmpi ne, %10, %c0_i32_9 : i32
    scf.if %11 {
      %c0_10 = arith.constant 0 : index
      %c0_11 = arith.constant 0 : index
      %12 = vector.load %arg7[%c0_10, %c0_11] : memref<8x128xf32, #tpu.memory_space<vmem>>, vector<8x128xf32>
      %cst_12 = arith.constant dense<0.000000e+00> : vector<128xf32>
      %13 = vector.multi_reduction <add>, %12, %cst_12 [0] : vector<8x128xf32> to vector<128xf32>
      %14 = vector.shape_cast %13 : vector<128xf32> to vector<1x128xf32>
      %cst_13 = arith.constant 1.250000e-01 : f32
      %15 = vector.broadcast %cst_13 : f32 to vector<1x128xf32>
      %16 = arith.mulf %14, %15 : vector<1x128xf32>
      %17 = vector.broadcast %16 : vector<1x128xf32> to vector<8x128xf32>
      %18 = arith.subf %12, %17 : vector<8x128xf32>
      %19 = arith.mulf %18, %18 : vector<8x128xf32>
      %cst_14 = arith.constant dense<0.000000e+00> : vector<128xf32>
      %20 = vector.multi_reduction <add>, %19, %cst_14 [0] : vector<8x128xf32> to vector<128xf32>
      %21 = vector.shape_cast %20 : vector<128xf32> to vector<1x128xf32>
      %cst_15 = arith.constant 1.250000e-01 : f32
      %22 = vector.broadcast %cst_15 : f32 to vector<1x128xf32>
      %23 = arith.mulf %21, %22 : vector<1x128xf32>
      %c0_16 = arith.constant 0 : index
      %c0_17 = arith.constant 0 : index
      %24 = vector.load %arg4[%c0_16, %c0_17] : memref<1x128xf32, #tpu.memory_space<vmem>>, vector<1x128xf32>
      %cst_18 = arith.constant 9.99999974E-6 : f32
      %25 = vector.broadcast %cst_18 : f32 to vector<1x128xf32>
      %26 = arith.addf %23, %25 : vector<1x128xf32>
      %27 = math.rsqrt %26 : vector<1x128xf32>
      %28 = arith.mulf %24, %27 : vector<1x128xf32>
      %c0_19 = arith.constant 0 : index
      %c0_20 = arith.constant 0 : index
      %29 = vector.load %arg5[%c0_19, %c0_20] : memref<1x128xf32, #tpu.memory_space<vmem>>, vector<1x128xf32>
      %30 = arith.mulf %16, %28 : vector<1x128xf32>
      %31 = arith.subf %29, %30 : vector<1x128xf32>
      %32 = vector.broadcast %28 : vector<1x128xf32> to vector<8x128xf32>
      %33 = arith.mulf %12, %32 : vector<8x128xf32>
      %34 = vector.broadcast %31 : vector<1x128xf32> to vector<8x128xf32>
      %35 = arith.addf %33, %34 : vector<8x128xf32>
      %cst_21 = arith.constant 0.000000e+00 : f32
      %36 = vector.broadcast %cst_21 : f32 to vector<8x128xf32>
      %37 = arith.cmpf oge, %35, %36 : vector<8x128xf32>
      %cst_22 = arith.constant 0.00999999977 : f32
      %38 = vector.broadcast %cst_22 : f32 to vector<8x128xf32>
      %39 = arith.mulf %38, %35 : vector<8x128xf32>
      %40 = arith.select %37, %35, %39 : vector<8x128xi1>, vector<8x128xf32>
      %c0_23 = arith.constant 0 : index
      %c0_24 = arith.constant 0 : index
      %41 = vector.load %arg6[%c0_23, %c0_24] : memref<8x128xf32, #tpu.memory_space<vmem>>, vector<8x128xf32>
      tpu.vector_store %arg6[%c0_23, %c0_24], %40 {strides = array<i32>} : memref<8x128xf32, #tpu.memory_space<vmem>>, vector<8x128xf32>,
    } else {
    }
    return
  }
  func.func @transform_0(%arg0: i32, %arg1: i32) -> (i32, i32) {
    %c0_i32 = arith.constant 0 : i32
    %c0_i32_0 = arith.constant 0 : i32
    return %c0_i32, %arg1 : i32, i32
  }
  func.func @transform_1(%arg0: i32, %arg1: i32) -> (i32, i32) {
    %c0_i32 = arith.constant 0 : i32
    return %arg1, %arg0 : i32, i32
  }
  func.func @transform_2(%arg0: i32, %arg1: i32) -> (i32, i32) {
    %c0_i32 = arith.constant 0 : i32
    %c0_i32_0 = arith.constant 0 : i32
    return %c0_i32, %arg0 : i32, i32
  }
  func.func @transform_3(%arg0: i32, %arg1: i32) -> (i32, i32) {
    %c0_i32 = arith.constant 0 : i32
    %c0_i32_0 = arith.constant 0 : i32
    return %c0_i32, %arg0 : i32, i32
  }
  func.func @transform_4(%arg0: i32, %arg1: i32) -> (i32, i32) {
    %c0_i32 = arith.constant 0 : i32
    %c0_i32_0 = arith.constant 0 : i32
    return %c0_i32, %arg0 : i32, i32
  }
}

</mosaic_0001>

<llo_original>
// kernel: dense_forward.1
$region0: #{dense_forward.1}
  #allocation0 [shape = 'u32[]', space=smem, size = 0x4, offset = 0x4, fixed_abs, tag = 'smem constant byte address 0x4 - core index']
  #allocation1 [shape = 'u32[144,128]{1,0:T(1,128)}', space=vmem, size = 0x12000, scoped, tag = 'internal scratch']
  #allocation2 [shape = 'f32[8,128]{1,0:T(8,128)}', space=vmem, size = 0x1000, scoped, tag = 'scratch operand']
  %s0 = inlined_call_operand.vmem [shape: bf16[8,32], index: 0, kind: input, shape index: {}]
  %s1 = inlined_call_operand.hbm [shape: bf16[32,128], index: 1, kind: input, shape index: {}]
  %s2 = inlined_call_operand.vmem [shape: f32[1,128], index: 2, kind: input, shape index: {}]
  %s3 = inlined_call_operand.vmem [shape: f32[1,128], index: 3, kind: input, shape index: {}]
  %s4 = inlined_call_operand.hbm [shape: f32[8,128], index: 4, kind: output, shape index: {}]
  %s5 = sld [smem:[#allocation0]]
  $region38: #{dense_forward.1} parent=0
    _
  %s7 = ssub.s32 1, %s5
  %s8 = scalar_select 0, %s7, %s5
  $region1: #{dense_forward.1} parent=0
    #allocation3 [shape = 'u8[8192]{0}', space=vmem, size = 0x2000, scoped, tag = 'input window, operand 1, single buffered']
    #allocation4 [shape = 's32[1]{0}', space=sflag, size = 0x4, scoped, tag = 'scoped memory for dense_forward.1']
    #allocation5 [shape = 's32[1]{0}', space=sflag, size = 0x4, scoped, tag = 'scoped memory for dense_forward.1']
    #allocation6 [shape = 'u8[4096]{0}', space=vmem, size = 0x1000, scoped, tag = 'output window, operand 0, single buffered']
    %9 = vsyncpa [#allocation4], 0
    %10 = vsyncpa [#allocation5], 0
    // Predicated region
    $region2: #{dense_forward.1} parent=1 // pred_check
      _
    $region3: #{dense_forward.1} parent=1 // pred_check_branch
      %12 = sbr.rel (0) target = $region5
    $region4: #{dense_forward.1} parent=1 // pred_region
      _
    $region5: #{dense_forward.1} parent=1 // pred_fallthru
      _
    // Predicated region
    $region6: #{dense_forward.1} parent=1 // pred_check
      _
    $region7: #{dense_forward.1} parent=1 // pred_check_branch
      %14 = sbr.rel (0) target = $region9
    $region8: #{dense_forward.1} parent=1 // pred_region
      %s16 = ssub.s32 256, 256
      %17 = vsyncadd [#allocation4], %s16
      %s18 = sshll.u32 [#allocation3], 4
      %s19 = int_to_ptr.vmem [resolvable:$true] %s18
      %24 = dma.hbm_to_vmem [thread:$0]  %s1, 256, %s19, [#allocation4], 64, 64, 4
    $region9: #{dense_forward.1} parent=1 // pred_fallthru
      _
    // Predicated region
    $region10: #{dense_forward.1} parent=1 // pred_check
      _
    $region11: #{dense_forward.1} parent=1 // pred_check_branch
      %26 = sbr.rel (0) target = $region13
    $region12: #{dense_forward.1} parent=1 // pred_region
      _
    $region13: #{dense_forward.1} parent=1 // pred_fallthru
      _
    // Predicated region
    $region14: #{dense_forward.1} parent=1 // pred_check
      _
    $region15: #{dense_forward.1} parent=1 // pred_check_branch
      %28 = sbr.rel (0) target = $region17
    $region16: #{dense_forward.1} parent=1 // pred_region
      _
    $region17: #{dense_forward.1} parent=1 // pred_fallthru
      _
    // Predicated region
    $region18: #{dense_forward.1} parent=1 // pred_check
      _
    $region19: #{dense_forward.1} parent=1 // pred_check_branch
      %30 = sbr.rel (0) target = $region21
    $region20: #{dense_forward.1} parent=1 // pred_region
      %31 = dma.done [#allocation4], 256
    $region21: #{dense_forward.1} parent=1 // pred_fallthru
      _
    %p33 = scmp.eq.s32.totalorder 0, 0
    // Predicated region
    $region22: #{dense_forward.1} parent=1 // pred_check
      %p34 = pneg %p33
    $region23: #{dense_forward.1} parent=1 // pred_check_branch
      %36 = sbr.rel (%p34) target = $region25
    $region24: #{dense_forward.1} parent=1 // pred_region
      %37 = vst [vmem:[#allocation2] sm:$0xff] 0.0
    $region25: #{dense_forward.1} parent=1 // pred_fallthru
      _
    %v38 = vld [vmem:[#allocation2] sm:$0xff]
    %v39 = vld [vmem:[%s0] sm:$0xf]
    %v40 = vld [vmem:[#allocation3] sm:$0xf]
    %v41 = vld [vmem:[#allocation3 + $0x4] sm:$0xf]
    %v42 = vld [vmem:[#allocation3 + $0x8] sm:$0xf]
    %v43 = vld [vmem:[#allocation3 + $0xc] sm:$0xf]
    %v48 = vunpack.c.l.b16 %v40
    %v49 = vunpack.c.l.b16 %v41
    %v50 = vunpack.c.l.b16 %v42
    %v51 = vunpack.c.l.b16 %v43
    %v52 = vpack.c.b16 %v49, %v48
    %v53 = vpack.c.b16 %v51, %v50
    %vm56 = vcmask 261120
    %v58 = vsel %vm56, %v39, 0
    %60 = vmatprep.subr.bf16.mxu0 0
    %61 = vmatpush1.bf16.msra.mxu0 0
    %62 = vmatprep.subr.bf16.mxu0 0
    %63 = vmatpush1.bf16.msra.mxu0 0
    %64 = vmatprep.subr.bf16.mxu0 0
    %65 = vmatpush1.bf16.msra.mxu0 0
    %66 = vmatprep.subr.bf16.mxu0 0
    %67 = vmatpush1.bf16.msra.mxu0 0
    %68 = vmatprep.subr.bf16.mxu0 0
    %69 = vmatpush1.bf16.msra.mxu0 0
    %70 = vmatprep.subr.bf16.mxu0 0
    %71 = vmatpush1.bf16.msra.mxu0 0
    %72 = vmatprep.subr.bf16.mxu0 0
    %73 = vmatpush1.bf16.msra.mxu0 %v53
    %74 = vmatprep.subr.bf16.mxu0 0
    %75 = vmatpush1.bf16.msra.mxu0 %v52
    %76 = vmatprep.subr.bf16.mxu0 0
    %77 = vmatpush2.bf16.msra.mxu0 0
    %78 = vmatprep.subr.bf16.mxu0 0
    %79 = vmatpush2.bf16.msra.mxu0 0
    %80 = vmatprep.subr.bf16.mxu0 0
    %81 = vmatpush2.bf16.msra.mxu0 0
    %82 = vmatprep.subr.bf16.mxu0 0
    %83 = vmatpush2.bf16.msra.mxu0 0
    %84 = vmatprep.subr.bf16.mxu0 0
    %85 = vmatpush2.bf16.msra.mxu0 0
    %86 = vmatprep.subr.bf16.mxu0 0
    %87 = vmatpush2.bf16.msra.mxu0 0
    %88 = vmatprep.subr.bf16.mxu0 0
    %89 = vmatpush2.bf16.msra.mxu0 0
    %90 = vmatprep.subr.bf16.mxu0 0
    %91 = vmatpush2.bf16.msra.mxu0 0
    %92 = vmatprep.mubr.bf16.mxu0 0
    %93 = vmatmul.mubr.bf16.gmra.mxu0 %v58
    %v94 = vpop.f32.mrf.mxu0
    %v95 = vadd.f32 0.0, %v94
    %v96 = vpop.f32.mrf.mxu0
    %v97 = vpop.f32.mrf.mxu0
    %v98 = vpop.f32.mrf.mxu0
    %99 = vdwg.mxu0
    %v100 = vadd.f32 %v38, %v95
    %101 = vst [vmem:[#allocation2] sm:$0xff] %v100
    // Predicated region
    $region26: #{dense_forward.1} parent=1 // pred_check
      %p102 = pneg %p33
    $region27: #{dense_forward.1} parent=1 // pred_check_branch
      %104 = sbr.rel (%p102) target = $region29
    $region28: #{dense_forward.1} parent=1 // pred_region
      %v105 = vld [vmem:[#allocation2] sm:$0xff]
      %v106 = vrot.slane %v105, 4
      %v107 = vadd.f32 %v105, %v106
      %v108 = vrot.slane %v107, 2
      %v109 = vadd.f32 %v107, %v108
      %v110 = vrot.slane %v109, 1
      %v111 = vadd.f32 %v109, %v110
      %v112 = vmul.f32 %v111, 0.125
      %v113 = vsub.f32 %v105, %v112
      %v114 = vmul.f32 %v113, %v113
      %v115 = vrot.slane %v114, 4
      %v116 = vadd.f32 %v114, %v115
      %v117 = vrot.slane %v116, 2
      %v118 = vadd.f32 %v116, %v117
      %v119 = vrot.slane %v118, 1
      %v120 = vadd.f32 %v118, %v119
      %v121 = vmul.f32 %v120, 0.125
      %v122 = vld [vmem:[%s2] sm:$0x1]
      %v123 = vadd.f32 %v121, 1e-05
      %v124 = vrsqrt.pop %v123
      %v125 = vmul.f32 %v122, %v124
      %v126 = vld [vmem:[%s3] sm:$0x1]
      %v127 = vmul.f32 %v112, %v125
      %v128 = vsub.f32 %v126, %v127
      %v130 = vlaneseq
      %v131 = vshrl.u32 %v130, 7
      %v132 = vsub.s32 0, %v131
      %v133 = vrot.slane %v125, %v132
      %v135 = vmul.f32 %v105, %v133
      %v137 = vlaneseq
      %v138 = vshrl.u32 %v137, 7
      %v139 = vsub.s32 0, %v138
      %v140 = vrot.slane %v128, %v139
      %v142 = vadd.f32 %v135, %v140
      %vm143 = vcmp.ge.f32.partialorder %v142, 0.0
      %v144 = vmul.f32 %v142, 0.01
      %v145 = vsel %vm143, %v142, %v144
      %146 = vst [vmem:[#allocation6] sm:$0xff] %v145
    $region29: #{dense_forward.1} parent=1 // pred_fallthru
      _
    // Predicated region
    $region30: #{dense_forward.1} parent=1 // pred_check
      _
    $region31: #{dense_forward.1} parent=1 // pred_check_branch
      %148 = sbr.rel (0) target = $region33
    $region32: #{dense_forward.1} parent=1 // pred_region
      %s150 = ssub.s32 128, 128
      %151 = vsyncadd [#allocation5], %s150
      %s153 = sshll.u32 [#allocation6], 4
      %s154 = int_to_ptr.vmem [resolvable:$true] %s153
      %156 = dma.vmem_to_hbm [thread:$0]  %s154, 128, %s4, [#allocation5]
    $region33: #{dense_forward.1} parent=1 // pred_fallthru
      _
    // Predicated region
    $region34: #{dense_forward.1} parent=1 // pred_check
      _
    $region35: #{dense_forward.1} parent=1 // pred_check_branch
      %158 = sbr.rel (0) target = $region37
    $region36: #{dense_forward.1} parent=1 // pred_region
      %159 = dma.done [#allocation5], 128
    $region37: #{dense_forward.1} parent=1 // pred_fallthru
      _
    %160 = vsyncpa [#allocation4], 1
    %161 = vsyncpa [#allocation5], 1

</llo_original>
